<compile_context>
chip_gen: v5e
topology: v5e:2x2
jax: 0.10.0
libtpu: 0.0.40
codegen_flags: <defaults>
</compile_context>

<pallas_src>
import functools
from typing import NamedTuple, Optional

import jax
import jax.numpy as jnp
from jax.experimental import pallas as pl
from jax.experimental.pallas import tpu as pltpu


def _round_up(n: int, m: int) -> int:
    return ((n + m - 1) // m) * m


def _vmem_capacity_bytes() -> int:
    """Per-core VMEM capacity (generation-aware), with a safe fallback."""
    try:
        info = pltpu.get_tpu_info()
        cap = getattr(info, "vmem_capacity_bytes", None)
        if cap:
            return int(cap)
    except Exception:
        pass
    return 128 << 20  # v5e / v6e


class ResidualBlockParams(NamedTuple):
    """Packed, lane-dense parameters (build once, reuse every call)."""
    wa: jax.Array      # (input_dim, Hp + Op) = [W1 | Ws], compute dtype, 0-padded
    ba: jax.Array      # (1, Hp + Op)         = [b1 | b2 + bs], f32, 0-padded
    w2: jax.Array      # (Hp, Op), compute dtype, 0-padded
    ln: jax.Array      # (2, Op) f32: row0 gamma, row1 beta, 0-padded
    input_dim: int
    hidden: int
    output_dim: int
    hidden_pad: int    # Hp (multiple of 128)
    out_pad: int       # Op (multiple of 128)


def pack_residual_block_params(
    w1, b1, w2, b2, ws, bs, gamma=None, beta=None, *,
    compute_dtype=jnp.float32,
) -> ResidualBlockParams:
    """One-time packing: fuse [W1 | Ws], fold b2+bs, zero-pad to 128 lanes."""
    input_dim, hidden = w1.shape
    output_dim = w2.shape[1]
    Hp = _round_up(hidden, 128)
    Op = _round_up(output_dim, 128)
    cdt = jnp.dtype(compute_dtype)

    w1p = jnp.zeros((input_dim, Hp), cdt).at[:, :hidden].set(w1.astype(cdt))
    wsp = jnp.zeros((input_dim, Op), cdt).at[:, :output_dim].set(ws.astype(cdt))
    wa = jnp.concatenate([w1p, wsp], axis=1)                     # (input_dim, Hp+Op)

    b1p = jnp.zeros((Hp,), jnp.float32).at[:hidden].set(b1.astype(jnp.float32))
    bop = jnp.zeros((Op,), jnp.float32).at[:output_dim].set(
        (b2 + bs).astype(jnp.float32))                            # fold b2 + bs
    ba = jnp.concatenate([b1p, bop]).reshape(1, Hp + Op)

    w2p = jnp.zeros((Hp, Op), cdt).at[:hidden, :output_dim].set(w2.astype(cdt))

    g = jnp.ones((output_dim,), jnp.float32) if gamma is None else gamma.astype(jnp.float32)
    bta = jnp.zeros((output_dim,), jnp.float32) if beta is None else beta.astype(jnp.float32)
    # Padded lanes of gamma/beta stay exactly zero so padding never leaks into
    # the sliced output (invariant relied on after LayerNorm).
    ln = (jnp.zeros((2, Op), jnp.float32)
          .at[0, :output_dim].set(g)
          .at[1, :output_dim].set(bta))

    return ResidualBlockParams(wa, ba, w2p, ln,
                               input_dim, hidden, output_dim, Hp, Op)


def _residual_block_kernel(
    x_ref,    # (bm, input_dim)
    wa_ref,   # (input_dim, Hp + Op)
    ba_ref,   # (1, Hp + Op) f32
    w2_ref,   # (Hp, Op)
    ln_ref,   # (2, Op) f32
    o_ref,    # (bm, Op)
    *,
    hidden_pad: int,
    out_dim: int,
    eps: float,
    use_layer_norm: bool,
):
    x = x_ref[...]

    # Fused first matmul: one MXU pass of x against [W1 | Ws]; bias rides along.
    xw = jnp.dot(x, wa_ref[...], preferred_element_type=jnp.float32) + ba_ref[...]
    h = jnp.maximum(xw[:, :hidden_pad], 0.0).astype(w2_ref.dtype)
    skip = xw[:, hidden_pad:]                       # already holds (b2 + bs)

    y = jnp.dot(h, w2_ref[...], preferred_element_type=jnp.float32) + skip

    if use_layer_norm:
        # One-pass stats in f32; padded lanes of y are exactly zero so they
        # contribute nothing; divide by the TRUE feature width.  Variance is
        # clamped at 0 to guard against cancellation in E[y^2]-E[y]^2.
        inv_n = 1.0 / out_dim
        s = jnp.sum(y, axis=-1, keepdims=True)
        ss = jnp.sum(y * y, axis=-1, keepdims=True)
        mean = s * inv_n
        var = jnp.maximum(ss * inv_n - mean * mean, 0.0)
        y = (y - mean) * jax.lax.rsqrt(var + eps)
        ln = ln_ref[...]
        y = y * ln[0:1, :] + ln[1:2, :]

    o_ref[...] = y.astype(o_ref.dtype)


def residual_block_apply(
    x, params: ResidualBlockParams, *,
    use_layer_norm: bool = True, eps: float = 1e-5,
    bm: Optional[int] = None, return_padded: bool = False,
):
    """x: (B, input_dim) -> (B, output_dim) (or (B, Op) if return_padded)."""
    B, input_dim = x.shape
    assert input_dim == params.input_dim
    Hp, Op = params.hidden_pad, params.out_pad
    cdt = params.wa.dtype
    if x.dtype != cdt:
        x = x.astype(cdt)          # bf16 compute path: halves x DMA bytes
    itemsize = jnp.dtype(cdt).itemsize

    # Resident weights (Pallas double-buffers each input block by default).
    weight_bytes = 2 * ((params.wa.size + params.w2.size) * itemsize
                        + (params.ba.size + params.ln.size) * 4)
    budget = int(0.75 * _vmem_capacity_bytes())   # ~48 MiB v7x, ~96 MiB v5e/v6e

    def step_bytes(m):
        tiles = 2 * m * (input_dim + Op) * itemsize   # double-buffered x + out tiles
        work = 2 * m * (Hp + 2 * Op) * 4              # f32 xw / h / y live values (rough)
        return tiles + work

    if bm is None:
        align = 16 if itemsize <= 2 else 8            # bf16 packs 16 rows / vreg
        bm = min(2048, _round_up(B, align))
        if B > 2 * align:
            # Guarantee >= 2 grid steps so "parallel" spreads rows across both
            # TensorCores on v7x.
            bm = min(bm, _round_up(-(-B // 2), align))
        while bm > align and weight_bytes + step_bytes(bm) > budget:
            bm = max(align, _round_up(bm // 2, align))

    grid = (pl.cdiv(B, bm),)   # ragged last block is clipped by Pallas; rows independent
    vmem_limit = int(min(budget,
                         max(32 << 20, weight_bytes + step_bytes(bm) + (8 << 20))))

    kernel = functools.partial(
        _residual_block_kernel,
        hidden_pad=Hp, out_dim=params.output_dim, eps=eps,
        use_layer_norm=use_layer_norm,
    )
    full = lambda shape: pl.BlockSpec(shape, lambda i: (0, 0))

    out = pl.pallas_call(
        kernel,
        out_shape=jax.ShapeDtypeStruct((B, Op), x.dtype),
        grid_spec=pltpu.PrefetchScalarGridSpec(
            num_scalar_prefetch=0,
            grid=grid,
            in_specs=[
                pl.BlockSpec((bm, input_dim), lambda i: (i, 0)),   # x row tile
                full((input_dim, Hp + Op)),                        # [W1 | Ws]
                full((1, Hp + Op)),                                # [b1 | b2+bs]
                full((Hp, Op)),                                    # W2
                full((2, Op)),                                     # gamma / beta
            ],
            out_specs=pl.BlockSpec((bm, Op), lambda i: (i, 0)),
        ),
        compiler_params=pltpu.CompilerParams(
            dimension_semantics=("parallel",),
            vmem_limit_bytes=vmem_limit,
        ),
    )(x, params.wa, params.ba, params.w2, params.ln)

    if return_padded:
        return out                       # lane-dense (B, Op) for downstream Pallas blocks
    return out[:, :params.output_dim]


def residual_block(x, w1, b1, w2, b2, ws, bs, gamma=None, beta=None, *,
                   use_layer_norm: bool = True, eps: float = 1e-5,
                   bm: Optional[int] = None, compute_dtype=None):
    """Convenience one-shot wrapper (packs params on every call; prefer
    pack_residual_block_params + residual_block_apply in a real model)."""
    params = pack_residual_block_params(
        w1, b1, w2, b2, ws, bs, gamma, beta,
        compute_dtype=compute_dtype if compute_dtype is not None else x.dtype)
    return residual_block_apply(x, params, use_layer_norm=use_layer_norm,
                                eps=eps, bm=bm)


def _reference(x, w1, b1, w2, b2, ws, bs, gamma, beta, *, use_layer_norm=True, eps=1e-5):
    h = jnp.maximum(x @ w1 + b1, 0.0)
    y = (h @ w2 + b2) + (x @ ws + bs)
    if not use_layer_norm:
        return y
    mean = jnp.mean(y, axis=-1, keepdims=True)
    var = jnp.mean((y - mean) ** 2, axis=-1, keepdims=True)
    return (y - mean) / jnp.sqrt(var + eps) * gamma + beta


if __name__ == "__main__":
    # Module hyperparameters (small, consistent with the forward pass).
    batch = 16
    input_dim = 32
    hidden_size = 64
    output_dim = 32
    use_layer_norm = True
    # dropout = 0.1 -> identity at inference time (no RNG needed).
    # TODO(synk): training-mode dropout would need an in-kernel pltpu.prng_* mask.

    key = jax.random.PRNGKey(0)
    keys = jax.random.split(key, 9)

    x = jax.random.normal(keys[0], (batch, input_dim), dtype=jnp.float32)

    # Deterministic synthetic parameters (nn.Linear weights held as (in, out)).
    w1 = jax.random.normal(keys[1], (input_dim, hidden_size), jnp.float32) * 0.1
    b1 = jax.random.normal(keys[2], (hidden_size,), jnp.float32) * 0.1
    w2 = jax.random.normal(keys[3], (hidden_size, output_dim), jnp.float32) * 0.1
    b2 = jax.random.normal(keys[4], (output_dim,), jnp.float32) * 0.1
    ws = jax.random.normal(keys[5], (input_dim, output_dim), jnp.float32) * 0.1
    bs = jax.random.normal(keys[6], (output_dim,), jnp.float32) * 0.1
    gamma = jnp.ones((output_dim,), jnp.float32) + 0.01 * jax.random.normal(
        keys[7], (output_dim,), jnp.float32)
    beta = jnp.zeros((output_dim,), jnp.float32)

    # Pack ONCE; reuse across calls (hoisted off the per-call path).
    params = pack_residual_block_params(w1, b1, w2, b2, ws, bs, gamma, beta)

    # 1) Small batch, single grid step (matches the module's nominal usage).
    out = jax.block_until_ready(
        residual_block_apply(x, params, use_layer_norm=use_layer_norm))
    ref = _reference(x, w1, b1, w2, b2, ws, bs, gamma, beta,
                     use_layer_norm=use_layer_norm)
    assert out.shape == (batch, output_dim)
    assert jnp.allclose(out, ref, atol=1e-4, rtol=1e-4), "mismatch (small batch)"

    # 2) Larger, non-divisible batch: multi-step grid (>=2 steps for v7x
    #    megacore) with a ragged last block (no explicit pad copy of x).
    batch_big = 300
    x_big = jax.random.normal(keys[8], (batch_big, input_dim), dtype=jnp.float32)
    out_big = jax.block_until_ready(
        residual_block_apply(x_big, params, use_layer_norm=use_layer_norm))
    ref_big = _reference(x_big, w1, b1, w2, b2, ws, bs, gamma, beta,
                         use_layer_norm=use_layer_norm)
    assert out_big.shape == (batch_big, output_dim)
    assert jnp.allclose(out_big, ref_big, atol=1e-3, rtol=1e-3), "mismatch (big batch)"

    # 3) bf16 compute path (f32 accumulation + f32 LayerNorm) — loose tolerance.
    params_bf16 = pack_residual_block_params(
        w1, b1, w2, b2, ws, bs, gamma, beta, compute_dtype=jnp.bfloat16)
    out_bf16 = jax.block_until_ready(
        residual_block_apply(x_big, params_bf16, use_layer_norm=use_layer_norm))
    assert out_bf16.shape == (batch_big, output_dim)
    assert jnp.allclose(out_bf16.astype(jnp.float32), ref_big,
                        atol=1e-1, rtol=1e-1), "mismatch (bf16 path)"

    print("KERNEL_OK")
</pallas_src>

<mosaic_0001>
module attributes {stable_mosaic.version = 11 : i64} {
  func.func @_residual_block_kernel(%arg0: i32, %arg1: memref<16x32xf32, #tpu.memory_space<vmem>>, %arg2: memref<32x256xf32, #tpu.memory_space<vmem>>, %arg3: memref<1x256xf32, #tpu.memory_space<vmem>>, %arg4: memref<128x128xf32, #tpu.memory_space<vmem>>, %arg5: memref<2x128xf32, #tpu.memory_space<vmem>>, %arg6: memref<16x128xf32, #tpu.memory_space<vmem>>) attributes {dimension_semantics = [#tpu.dimension_semantics<parallel>], iteration_bounds = array<i64: 1>, scalar_prefetch = 0 : i64, scratch_operands = 0 : i64, tpu.core_type = #tpu.core_type<tc>, window_params = [{transform_indices = @transform_0, window_bounds = array<i64: 16, 32>}, {pipeline_mode = #tpu.pipeline_mode<synchronous>, transform_indices = @transform_1, window_bounds = array<i64: 32, 256>}, {pipeline_mode = #tpu.pipeline_mode<synchronous>, transform_indices = @transform_2, window_bounds = array<i64: 1, 256>}, {pipeline_mode = #tpu.pipeline_mode<synchronous>, transform_indices = @transform_3, window_bounds = array<i64: 128, 128>}, {pipeline_mode = #tpu.pipeline_mode<synchronous>, transform_indices = @transform_4, window_bounds = array<i64: 2, 128>}, {transform_indices = @transform_5, window_bounds = array<i64: 16, 128>}]} {
    %c0 = arith.constant 0 : index
    %c0_0 = arith.constant 0 : index
    %0 = vector.load %arg1[%c0, %c0_0] : memref<16x32xf32, #tpu.memory_space<vmem>>, vector<16x32xf32>
    %c0_1 = arith.constant 0 : index
    %c0_2 = arith.constant 0 : index
    %1 = vector.load %arg2[%c0_1, %c0_2] : memref<32x256xf32, #tpu.memory_space<vmem>>, vector<32x256xf32>
    %cst = arith.constant dense<0.000000e+00> : vector<16x256xf32>
    %2 = tpu.matmul %0, %1, %cst {dimension_numbers = #tpu.dot_dimension_numbers<[1], [0], [0], [1], [0, 0, 1, 1], [], []>} : vector<16x32xf32>, vector<32x256xf32>, vector<16x256xf32> -> vector<16x256xf32>
    %c0_3 = arith.constant 0 : index
    %c0_4 = arith.constant 0 : index
    %3 = vector.load %arg3[%c0_3, %c0_4] : memref<1x256xf32, #tpu.memory_space<vmem>>, vector<1x256xf32>
    %4 = vector.broadcast %3 : vector<1x256xf32> to vector<16x256xf32>
    %5 = arith.addf %2, %4 : vector<16x256xf32>
    %6 = vector.extract_strided_slice %5 {offsets = [0, 0], sizes = [16, 128], strides = [1, 1]} : vector<16x256xf32> to vector<16x128xf32>
    %cst_5 = arith.constant 0.000000e+00 : f32
    %7 = vector.broadcast %cst_5 : f32 to vector<16x128xf32>
    %8 = arith.maximumf %6, %7 : vector<16x128xf32>
    %9 = vector.extract_strided_slice %5 {offsets = [0, 128], sizes = [16, 128], strides = [1, 1]} : vector<16x256xf32> to vector<16x128xf32>
    %c0_6 = arith.constant 0 : index
    %c0_7 = arith.constant 0 : index
    %10 = vector.load %arg4[%c0_6, %c0_7] : memref<128x128xf32, #tpu.memory_space<vmem>>, vector<128x128xf32>
    %cst_8 = arith.constant dense<0.000000e+00> : vector<16x128xf32>
    %11 = tpu.matmul %8, %10, %cst_8 {dimension_numbers = #tpu.dot_dimension_numbers<[1], [0], [0], [1], [0, 0, 1, 1], [], []>} : vector<16x128xf32>, vector<128x128xf32>, vector<16x128xf32> -> vector<16x128xf32>
    %12 = arith.addf %11, %9 : vector<16x128xf32>
    %cst_9 = arith.constant dense<0.000000e+00> : vector<16xf32>
    %13 = vector.multi_reduction <add>, %12, %cst_9 [1] : vector<16x128xf32> to vector<16xf32>
    %14 = vector.shape_cast %13 : vector<16xf32> to vector<16x1xf32>
    %15 = arith.mulf %12, %12 : vector<16x128xf32>
    %cst_10 = arith.constant dense<0.000000e+00> : vector<16xf32>
    %16 = vector.multi_reduction <add>, %15, %cst_10 [1] : vector<16x128xf32> to vector<16xf32>
    %17 = vector.shape_cast %16 : vector<16xf32> to vector<16x1xf32>
    %cst_11 = arith.constant 3.125000e-02 : f32
    %18 = vector.broadcast %cst_11 : f32 to vector<16x1xf32>
    %19 = arith.mulf %14, %18 : vector<16x1xf32>
    %cst_12 = arith.constant 3.125000e-02 : f32
    %20 = vector.broadcast %cst_12 : f32 to vector<16x1xf32>
    %21 = arith.mulf %17, %20 : vector<16x1xf32>
    %22 = arith.mulf %19, %19 : vector<16x1xf32>
    %23 = arith.subf %21, %22 : vector<16x1xf32>
    %cst_13 = arith.constant 0.000000e+00 : f32
    %24 = vector.broadcast %cst_13 : f32 to vector<16x1xf32>
    %25 = arith.maximumf %23, %24 : vector<16x1xf32>
    %26 = vector.broadcast %19 : vector<16x1xf32> to vector<16x128xf32>
    %27 = arith.subf %12, %26 : vector<16x128xf32>
    %cst_14 = arith.constant 9.99999974E-6 : f32
    %28 = vector.broadcast %cst_14 : f32 to vector<16x1xf32>
    %29 = arith.addf %25, %28 : vector<16x1xf32>
    %30 = math.rsqrt %29 : vector<16x1xf32>
    %31 = vector.broadcast %30 : vector<16x1xf32> to vector<16x128xf32>
    %32 = arith.mulf %27, %31 : vector<16x128xf32>
    %c0_15 = arith.constant 0 : index
    %c0_16 = arith.constant 0 : index
    %33 = vector.load %arg5[%c0_15, %c0_16] : memref<2x128xf32, #tpu.memory_space<vmem>>, vector<2x128xf32>
    %34 = vector.extract_strided_slice %33 {offsets = [0, 0], sizes = [1, 128], strides = [1, 1]} : vector<2x128xf32> to vector<1x128xf32>
    %35 = vector.broadcast %34 : vector<1x128xf32> to vector<16x128xf32>
    %36 = arith.mulf %32, %35 : vector<16x128xf32>
    %37 = vector.extract_strided_slice %33 {offsets = [1, 0], sizes = [1, 128], strides = [1, 1]} : vector<2x128xf32> to vector<1x128xf32>
    %38 = vector.broadcast %37 : vector<1x128xf32> to vector<16x128xf32>
    %39 = arith.addf %36, %38 : vector<16x128xf32>
    %c0_17 = arith.constant 0 : index
    %c0_18 = arith.constant 0 : index
    %40 = vector.load %arg6[%c0_17, %c0_18] : memref<16x128xf32, #tpu.memory_space<vmem>>, vector<16x128xf32>
    tpu.vector_store %arg6[%c0_17, %c0_18], %39 {strides = array<i32>} : memref<16x128xf32, #tpu.memory_space<vmem>>, vector<16x128xf32>,
    return
  }
  func.func @transform_0(%arg0: i32) -> (i32, i32) {
    %c0_i32 = arith.constant 0 : i32
    %c0_i32_0 = arith.constant 0 : i32
    return %arg0, %c0_i32 : i32, i32
  }
  func.func @transform_1(%arg0: i32) -> (i32, i32) {
    %c0_i32 = arith.constant 0 : i32
    %c0_i32_0 = arith.constant 0 : i32
    %c0_i32_1 = arith.constant 0 : i32
    return %c0_i32, %c0_i32_0 : i32, i32
  }
  func.func @transform_2(%arg0: i32) -> (i32, i32) {
    %c0_i32 = arith.constant 0 : i32
    %c0_i32_0 = arith.constant 0 : i32
    %c0_i32_1 = arith.constant 0 : i32
    return %c0_i32, %c0_i32_0 : i32, i32
  }
  func.func @transform_3(%arg0: i32) -> (i32, i32) {
    %c0_i32 = arith.constant 0 : i32
    %c0_i32_0 = arith.constant 0 : i32
    %c0_i32_1 = arith.constant 0 : i32
    return %c0_i32, %c0_i32_0 : i32, i32
  }
  func.func @transform_4(%arg0: i32) -> (i32, i32) {
    %c0_i32 = arith.constant 0 : i32
    %c0_i32_0 = arith.constant 0 : i32
    %c0_i32_1 = arith.constant 0 : i32
    return %c0_i32, %c0_i32_0 : i32, i32
  }
  func.func @transform_5(%arg0: i32) -> (i32, i32) {
    %c0_i32 = arith.constant 0 : i32
    %c0_i32_0 = arith.constant 0 : i32
    return %arg0, %c0_i32 : i32, i32
  }
}

</mosaic_0001>

<llo_original>
// kernel: tpu_custom_call.1
$region0: #{tpu_custom_call.1}
  #allocation0 [shape = 'u32[]', space=smem, size = 0x4, offset = 0x4, fixed_abs, tag = 'smem constant byte address 0x4 - core index']
  #allocation1 [shape = 'u32[72,128]{1,0:T(1,128)}', space=vmem, size = 0x9000, scoped, tag = 'internal scratch']
  %s0 = inlined_call_operand.hbm [shape: f32[16,32], index: 0, kind: input, shape index: {}]
  %s1 = inlined_call_operand.hbm [shape: f32[32,256], index: 1, kind: input, shape index: {}]
  %s2 = inlined_call_operand.hbm [shape: f32[1,256], index: 2, kind: input, shape index: {}]
  %s3 = inlined_call_operand.hbm [shape: f32[128,128], index: 3, kind: input, shape index: {}]
  %s4 = inlined_call_operand.vmem [shape: f32[2,128], index: 4, kind: input, shape index: {}]
  %s5 = inlined_call_operand.hbm [shape: f32[16,128], index: 5, kind: output, shape index: {}]
  %s6 = sld [smem:[#allocation0]]
  $region46: #{tpu_custom_call.1} parent=0
    _
  %s8 = ssub.s32 1, %s6
  %s9 = scalar_select 0, %s8, %s6
  $region1: #{tpu_custom_call.1} parent=0
    #allocation2 [shape = 'u8[8192]{0}', space=vmem, size = 0x2000, scoped, tag = 'input window, operand 0, single buffered']
    #allocation3 [shape = 's32[1]{0}', space=sflag, size = 0x4, scoped, tag = 'scoped memory for tpu_custom_call.1']
    #allocation4 [shape = 's32[1]{0}', space=sflag, size = 0x4, scoped, tag = 'scoped memory for tpu_custom_call.1']
    #allocation5 [shape = 'u8[32768]{0}', space=vmem, size = 0x8000, scoped, tag = 'input window, operand 1, single buffered']
    #allocation6 [shape = 's32[1]{0}', space=sflag, size = 0x4, scoped, tag = 'scoped memory for tpu_custom_call.1']
    #allocation7 [shape = 'u8[1024]{0}', space=vmem, size = 0x400, scoped, tag = 'input window, operand 2, single buffered']
    #allocation8 [shape = 'u8[65536]{0}', space=vmem, size = 0x10000, scoped, tag = 'input window, operand 3, single buffered']
    #allocation9 [shape = 's32[1]{0}', space=sflag, size = 0x4, scoped, tag = 'scoped memory for tpu_custom_call.1']
    #allocation10 [shape = 'u8[8192]{0}', space=vmem, size = 0x2000, scoped, tag = 'output window, operand 0, single buffered']
    %10 = vsyncpa [#allocation3], 0
    %11 = vsyncpa [#allocation6], 0
    %12 = vsyncpa [#allocation9], 0
    %13 = vsyncpa [#allocation4], 0
    // Predicated region
    $region2: #{tpu_custom_call.1} parent=1 // pred_check
      _
    $region3: #{tpu_custom_call.1} parent=1 // pred_check_branch
      %15 = sbr.rel (0) target = $region5
    $region4: #{tpu_custom_call.1} parent=1 // pred_region
      %17 = vsyncadd [#allocation3], 0
      %s18 = sshll.u32 %s0, 4
      %s19 = int_to_ptr.hbm [resolvable:$true] %s18
      %s20 = sshll.u32 [#allocation2], 4
      %s21 = int_to_ptr.vmem [resolvable:$true] %s20
      %26 = dma.hbm_to_vmem [thread:$0]  %s19, 256, %s21, [#allocation3], 128, 128, 8
    $region5: #{tpu_custom_call.1} parent=1 // pred_fallthru
      _
    // Predicated region
    $region6: #{tpu_custom_call.1} parent=1 // pred_check
      _
    $region7: #{tpu_custom_call.1} parent=1 // pred_check_branch
      %28 = sbr.rel (0) target = $region9
    $region8: #{tpu_custom_call.1} parent=1 // pred_region
      %30 = vsyncadd [#allocation6], 0
      %s31 = sshll.u32 %s1, 4
      %s32 = int_to_ptr.hbm [resolvable:$true] %s31
      %s33 = sshll.u32 [#allocation5], 4
      %s34 = int_to_ptr.vmem [resolvable:$true] %s33
      %39 = dma.hbm_to_vmem [thread:$0]  %s32, 1024, %s34, [#allocation6], 256, 256, 16
    $region9: #{tpu_custom_call.1} parent=1 // pred_fallthru
      _
    // Predicated region
    $region10: #{tpu_custom_call.1} parent=1 // pred_check
      _
    $region11: #{tpu_custom_call.1} parent=1 // pred_check_branch
      %41 = sbr.rel (0) target = $region13
    $region12: #{tpu_custom_call.1} parent=1 // pred_region
      %43 = vsyncadd [#allocation6], 0
      %s45 = sshll.u32 %s2, 4
      %s46 = int_to_ptr.hbm [resolvable:$true] %s45
      %s47 = sshll.u32 [#allocation7], 4
      %s48 = int_to_ptr.vmem [resolvable:$true] %s47
      %50 = dma.hbm_to_vmem [thread:$0]  %s46, 32, %s48, [#allocation6]
    $region13: #{tpu_custom_call.1} parent=1 // pred_fallthru
      _
    // Predicated region
    $region14: #{tpu_custom_call.1} parent=1 // pred_check
      _
    $region15: #{tpu_custom_call.1} parent=1 // pred_check_branch
      %52 = sbr.rel (0) target = $region17
    $region16: #{tpu_custom_call.1} parent=1 // pred_region
      %54 = vsyncadd [#allocation9], 0
      %s55 = sshll.u32 %s3, 4
      %s56 = int_to_ptr.hbm [resolvable:$true] %s55
      %s57 = sshll.u32 [#allocation8], 4
      %s58 = int_to_ptr.vmem [resolvable:$true] %s57
      %63 = dma.hbm_to_vmem [thread:$0]  %s56, 2048, %s58, [#allocation9], 128, 128, 8
    $region17: #{tpu_custom_call.1} parent=1 // pred_fallthru
      _
    // Predicated region
    $region18: #{tpu_custom_call.1} parent=1 // pred_check
      _
    $region19: #{tpu_custom_call.1} parent=1 // pred_check_branch
      %65 = sbr.rel (0) target = $region21
    $region20: #{tpu_custom_call.1} parent=1 // pred_region
      _
    $region21: #{tpu_custom_call.1} parent=1 // pred_fallthru
      _
    // Predicated region
    $region22: #{tpu_custom_call.1} parent=1 // pred_check
      _
    $region23: #{tpu_custom_call.1} parent=1 // pred_check_branch
      %67 = sbr.rel (0) target = $region25
    $region24: #{tpu_custom_call.1} parent=1 // pred_region
      %69 = dma.done [#allocation3], 256
    $region25: #{tpu_custom_call.1} parent=1 // pred_fallthru
      _
    // Predicated region
    $region26: #{tpu_custom_call.1} parent=1 // pred_check
      _
    $region27: #{tpu_custom_call.1} parent=1 // pred_check_branch
      %71 = sbr.rel (0) target = $region29
    $region28: #{tpu_custom_call.1} parent=1 // pred_region
      %73 = dma.done [#allocation6], 1024
    $region29: #{tpu_custom_call.1} parent=1 // pred_fallthru
      _
    // Predicated region
    $region30: #{tpu_custom_call.1} parent=1 // pred_check
      _
    $region31: #{tpu_custom_call.1} parent=1 // pred_check_branch
      %75 = sbr.rel (0) target = $region33
    $region32: #{tpu_custom_call.1} parent=1 // pred_region
      %77 = dma.done [#allocation6], 32
    $region33: #{tpu_custom_call.1} parent=1 // pred_fallthru
      _
    // Predicated region
    $region34: #{tpu_custom_call.1} parent=1 // pred_check
      _
    $region35: #{tpu_custom_call.1} parent=1 // pred_check_branch
      %79 = sbr.rel (0) target = $region37
    $region36: #{tpu_custom_call.1} parent=1 // pred_region
      %81 = dma.done [#allocation9], 2048
    $region37: #{tpu_custom_call.1} parent=1 // pred_fallthru
      _
    %v82 = vld [vmem:[#allocation2] sm:$0xff]
    %v83 = vld [vmem:[#allocation2 + $0x8] sm:$0xff]
    %v84 = vld [vmem:[#allocation5] sm:$0xff]
    %v85 = vld [vmem:[#allocation5 + $0x8] sm:$0xff]
    %v86 = vld [vmem:[#allocation5 + $0x10] sm:$0xff]
    %v87 = vld [vmem:[#allocation5 + $0x18] sm:$0xff]
    %v88 = vld [vmem:[#allocation5 + $0x20] sm:$0xff]
    %v89 = vld [vmem:[#allocation5 + $0x28] sm:$0xff]
    %v90 = vld [vmem:[#allocation5 + $0x30] sm:$0xff]
    %v91 = vld [vmem:[#allocation5 + $0x38] sm:$0xff]
    %v92 = vld [vmem:[#allocation7] sm:$0x3]
    %v94 = vperm.slane %v92, 0
    %v95 = vperm.slane %v92, 1
    %vm98 = vcmask 261120
    %v100 = vsel %vm98, %v82, 0
    %v103 = vsel %vm98, %v83, 0
    %105 = vmatpush.msra.mxu0 0.0
    %106 = vmatpush.msra.mxu0 0.0
    %107 = vmatpush.msra.mxu0 0.0
    %108 = vmatpush.msra.mxu0 0.0
    %109 = vmatpush.msra.mxu0 0.0
    %110 = vmatpush.msra.mxu0 0.0
    %111 = vmatpush.msra.mxu0 0.0
    %112 = vmatpush.msra.mxu0 0.0
    %113 = vmatpush.msra.mxu0 0.0
    %114 = vmatpush.msra.mxu0 0.0
    %115 = vmatpush.msra.mxu0 0.0
    %116 = vmatpush.msra.mxu0 0.0
    %117 = vmatpush.msra.mxu0 %v90
    %118 = vmatpush.msra.mxu0 %v88
    %119 = vmatpush.msra.mxu0 %v86
    %120 = vmatpush.msra.mxu0 %v84
    %121 = vmatmul.f32.gmra.mxu0 %v100
    %v122 = vpop.f32.mrf.mxu0
    %v123 = vadd.f32 %v94, %v122
    %124 = vmatmul.f32.gmra.mxu0 %v103
    %v125 = vpop.f32.mrf.mxu0
    %v126 = vadd.f32 %v94, %v125
    %127 = vdwg.mxu0
    %128 = vmatpush.msra.mxu0 0.0
    %129 = vmatpush.msra.mxu0 0.0
    %130 = vmatpush.msra.mxu0 0.0
    %131 = vmatpush.msra.mxu0 0.0
    %132 = vmatpush.msra.mxu0 0.0
    %133 = vmatpush.msra.mxu0 0.0
    %134 = vmatpush.msra.mxu0 0.0
    %135 = vmatpush.msra.mxu0 0.0
    %136 = vmatpush.msra.mxu0 0.0
    %137 = vmatpush.msra.mxu0 0.0
    %138 = vmatpush.msra.mxu0 0.0
    %139 = vmatpush.msra.mxu0 0.0
    %140 = vmatpush.msra.mxu0 %v91
    %141 = vmatpush.msra.mxu0 %v89
    %142 = vmatpush.msra.mxu0 %v87
    %143 = vmatpush.msra.mxu0 %v85
    %144 = vmatmul.f32.gmra.mxu0 %v100
    %v145 = vpop.f32.mrf.mxu0
    %v146 = vadd.f32 %v95, %v145
    %147 = vmatmul.f32.gmra.mxu0 %v103
    %v148 = vpop.f32.mrf.mxu0
    %v149 = vadd.f32 %v95, %v148
    %150 = vdwg.mxu0
    %v151 = vmax.f32 %v123, 0.0
    %v152 = vmax.f32 %v126, 0.0
    %v153 = vld [vmem:[#allocation8] sm:$0xff]
    %v154 = vld [vmem:[#allocation8 + $0x8] sm:$0xff]
    %v155 = vld [vmem:[#allocation8 + $0x10] sm:$0xff]
    %v156 = vld [vmem:[#allocation8 + $0x18] sm:$0xff]
    %v157 = vld [vmem:[#allocation8 + $0x20] sm:$0xff]
    %v158 = vld [vmem:[#allocation8 + $0x28] sm:$0xff]
    %v159 = vld [vmem:[#allocation8 + $0x30] sm:$0xff]
    %v160 = vld [vmem:[#allocation8 + $0x38] sm:$0xff]
    %v161 = vld [vmem:[#allocation8 + $0x40] sm:$0xff]
    %v162 = vld [vmem:[#allocation8 + $0x48] sm:$0xff]
    %v163 = vld [vmem:[#allocation8 + $0x50] sm:$0xff]
    %v164 = vld [vmem:[#allocation8 + $0x58] sm:$0xff]
    %v165 = vld [vmem:[#allocation8 + $0x60] sm:$0xff]
    %v166 = vld [vmem:[#allocation8 + $0x68] sm:$0xff]
    %v167 = vld [vmem:[#allocation8 + $0x70] sm:$0xff]
    %v168 = vld [vmem:[#allocation8 + $0x78] sm:$0xff]
    %169 = vmatpush.msra.mxu0 %v168
    %170 = vmatpush.msra.mxu0 %v167
    %171 = vmatpush.msra.mxu0 %v166
    %172 = vmatpush.msra.mxu0 %v165
    %173 = vmatpush.msra.mxu0 %v164
    %174 = vmatpush.msra.mxu0 %v163
    %175 = vmatpush.msra.mxu0 %v162
    %176 = vmatpush.msra.mxu0 %v161
    %177 = vmatpush.msra.mxu0 %v160
    %178 = vmatpush.msra.mxu0 %v159
    %179 = vmatpush.msra.mxu0 %v158
    %180 = vmatpush.msra.mxu0 %v157
    %181 = vmatpush.msra.mxu0 %v156
    %182 = vmatpush.msra.mxu0 %v155
    %183 = vmatpush.msra.mxu0 %v154
    %184 = vmatpush.msra.mxu0 %v153
    %185 = vmatmul.f32.gmra.mxu0 %v151
    %v186 = vpop.f32.mrf.mxu0
    %v187 = vadd.f32 %v146, %v186
    %188 = vmatmul.f32.gmra.mxu0 %v152
    %v189 = vpop.f32.mrf.mxu0
    %v190 = vadd.f32 %v149, %v189
    %191 = vdwg.mxu0
    %192 = vadd.xlane.f32.xlu0 %v187
    %v193 = vpop.xlane.xlu0 %192
    %194 = vadd.xlane.f32.xlu0 %v190
    %v195 = vpop.xlane.xlu0 %194
    %v196 = vmul.f32 %v187, %v187
    %v197 = vmul.f32 %v190, %v190
    %198 = vadd.xlane.f32.xlu0 %v196
    %v199 = vpop.xlane.xlu0 %198
    %200 = vadd.xlane.f32.xlu0 %v197
    %v201 = vpop.xlane.xlu0 %200
    %v202 = vmul.f32 %v193, 0.03125
    %v203 = vmul.f32 %v195, 0.03125
    %v204 = vmul.f32 %v199, 0.03125
    %v205 = vmul.f32 %v201, 0.03125
    %v206 = vmul.f32 %v202, %v202
    %v207 = vmul.f32 %v203, %v203
    %v208 = vsub.f32 %v204, %v206
    %v209 = vsub.f32 %v205, %v207
    %v210 = vmax.f32 %v208, 0.0
    %v211 = vmax.f32 %v209, 0.0
    %v212 = vsub.f32 %v187, %v202
    %v213 = vsub.f32 %v190, %v203
    %v214 = vadd.f32 %v210, 1e-05
    %v215 = vadd.f32 %v211, 1e-05
    %v216 = vrsqrt.pop %v214
    %v217 = vmul.f32 %v216, %v214
    %v218 = vmul.f32 %v217, %v216
    %v219 = vmul.f32 0.5, %v218
    %v220 = vsub.f32 1.5, %v219
    %v221 = vmul.f32 %v216, %v220
    %vm222 = vweird.f32 %v214
    %vm223 = vweird.f32 %v216
    %vm224 = vmor %vm222, %vm223
    %v225 = vsel %vm224, %v216, %v221
    %v226 = vrsqrt.pop %v215
    %v227 = vmul.f32 %v226, %v215
    %v228 = vmul.f32 %v227, %v226
    %v229 = vmul.f32 0.5, %v228
    %v230 = vsub.f32 1.5, %v229
    %v231 = vmul.f32 %v226, %v230
    %vm232 = vweird.f32 %v215
    %vm233 = vweird.f32 %v226
    %vm234 = vmor %vm232, %vm233
    %v235 = vsel %vm234, %v226, %v231
    %v236 = vmul.f32 %v212, %v225
    %v237 = vmul.f32 %v213, %v235
    %v238 = vld [vmem:[%s4] sm:$0x3]
    %v239 = vperm.slane %v238, 0
    %v240 = vmul.f32 %v236, %v239
    %v241 = vmul.f32 %v237, %v239
    %v242 = vperm.slane %v238, 1
    %v243 = vadd.f32 %v240, %v242
    %v244 = vadd.f32 %v241, %v242
    %245 = vst [vmem:[#allocation10] sm:$0xff] %v243
    %246 = vst [vmem:[#allocation10 + $0x8] sm:$0xff] %v244
    // Predicated region
    $region38: #{tpu_custom_call.1} parent=1 // pred_check
      _
    $region39: #{tpu_custom_call.1} parent=1 // pred_check_branch
      %248 = sbr.rel (0) target = $region41
    $region40: #{tpu_custom_call.1} parent=1 // pred_region
      %250 = vsyncadd [#allocation4], 0
      %s251 = sshll.u32 [#allocation10], 4
      %s252 = int_to_ptr.vmem [resolvable:$true] %s251
      %s253 = sshll.u32 %s5, 4
      %s254 = int_to_ptr.hbm [resolvable:$true] %s253
      %259 = dma.vmem_to_hbm [thread:$0]  %s252, 256, %s254, [#allocation4], 128, 128, 8
    $region41: #{tpu_custom_call.1} parent=1 // pred_fallthru
      _
    // Predicated region
    $region42: #{tpu_custom_call.1} parent=1 // pred_check
      _
    $region43: #{tpu_custom_call.1} parent=1 // pred_check_branch
      %261 = sbr.rel (0) target = $region45
    $region44: #{tpu_custom_call.1} parent=1 // pred_region
      %263 = dma.done [#allocation4], 256
    $region45: #{tpu_custom_call.1} parent=1 // pred_fallthru
      _
    %264 = vsyncpa [#allocation3], 1
    %265 = vsyncpa [#allocation6], 1
    %266 = vsyncpa [#allocation9], 1
    %267 = vsyncpa [#allocation4], 1

</llo_original>
